<compile_context>
chip_gen: v6e
topology: v6e:2x2x1
jax: 0.10.0
libtpu: 0.0.40
codegen_flags: <defaults>
</compile_context>

<pallas_src>
import numpy as np
import jax
import jax.numpy as jnp
from jax.experimental import pallas as pl
from jax.experimental.pallas import tpu as pltpu

_VMEM_LIMIT = 32 * 1024 * 1024  # above v5e's 16 MiB scoped default, <=48 MiB for v7x


# --------------------------------------------------------------------------
# small helpers
# --------------------------------------------------------------------------

def _cdiv(a, b):
    return -(-a // b)


def _round_up(x, m):
    return ((x + m - 1) // m) * m


def _silu(x):
    return x * jax.nn.sigmoid(x)


def _ln(x, w, b, eps=1e-5):
    # single-pass statistics: one pair of cross-lane reduces instead of two
    mean = jnp.mean(x, axis=-1, keepdims=True)
    msq = jnp.mean(x * x, axis=-1, keepdims=True)
    var = jnp.maximum(msq - mean * mean, 0.0)
    return (x - mean) * jax.lax.rsqrt(var + eps) * w + b


def _dot(a, w_ref):
    # bf16 MXU operands, f32 accumulation
    return jnp.dot(a.astype(jnp.bfloat16), w_ref[...],
                   preferred_element_type=jnp.float32)


def _row_tiled_call(kernel, row_inputs, const_inputs, out_dims, *, max_tile=4096):
    """Run `kernel` over row tiles of `row_inputs` (each (rows, d)).

    const_inputs (weights / packed biases, all 2-D) are passed whole each step.
    Tiles are chosen large and even, with >= 2 grid steps whenever possible so
    the "parallel" axis can shard across v7x's two TensorCores."""
    rows = row_inputs[0].shape[0]
    n_tiles = max(2, _cdiv(rows, max_tile))
    tile = _round_up(_cdiv(rows, n_tiles), 16)          # 16: safe for bf16 rows too
    tile = min(tile, _round_up(rows, 16))
    padded = _round_up(rows, tile)
    if padded != rows:
        row_inputs = [jnp.pad(x, ((0, padded - rows), (0, 0))) for x in row_inputs]
    grid = (padded // tile,)

    in_specs = ([pl.BlockSpec((tile, x.shape[1]), lambda i: (i, 0)) for x in row_inputs]
                + [pl.BlockSpec(c.shape, lambda i: (0, 0)) for c in const_inputs])
    out_specs = tuple(pl.BlockSpec((tile, d), lambda i: (i, 0)) for d in out_dims)
    out_shape = tuple(jax.ShapeDtypeStruct((padded, d), jnp.float32) for d in out_dims)
    if len(out_dims) == 1:
        out_specs, out_shape = out_specs[0], out_shape[0]

    outs = pl.pallas_call(
        kernel,
        grid=grid,
        in_specs=in_specs,
        out_specs=out_specs,
        out_shape=out_shape,
        compiler_params=pltpu.CompilerParams(
            dimension_semantics=("parallel",),
            vmem_limit_bytes=_VMEM_LIMIT),
    )(*row_inputs, *const_inputs)

    if len(out_dims) == 1:
        outs = (outs,)
    outs = tuple(o[:rows] for o in outs)
    return outs if len(outs) > 1 else outs[0]


# --------------------------------------------------------------------------
# Pallas kernels
# --------------------------------------------------------------------------

def _pool_kernel(m_ref, c_ref, h_ref, oc_ref, oh_ref):
    # Per-graph average pooling: (P, Npad) @ (Npad, {C,H}).  Tiny; kept f32 to
    # avoid geometric drift on pooled coordinates.
    m = m_ref[...]
    oc_ref[...] = jnp.dot(m, c_ref[...], preferred_element_type=jnp.float32)
    oh_ref[...] = jnp.dot(m, h_ref[...], preferred_element_type=jnp.float32)


def _edge_kernel(hp_ref, cd_ref,
                 w_em1, w_em2, w_em3, w_ge1p, w_ge1e, w_ge2, w_c1, w_c2,
                 c_ref, ef_ref, tr_ref):
    # Fused: pooling edge_mlp (ReLU MLP) + bn_edge LN + E_GCL edge model
    # (SiLU MLP, embedding_in folded into pair weights) + E_GCL coord model.
    # consts rows: 0 b_em1, 1 b_em2, 2 b_em3, 3 ln_e_w, 4 ln_e_b,
    #              5 b_ge1(eff), 6 b_ge2, 7 b_c1, 8 w_radial
    hp = hp_ref[...]                                      # (tile, 2H) bf16
    cd = cd_ref[...]                                      # (tile, 3)  f32

    # pooling edge_mlp + bn_edge LayerNorm (edge_attr never leaves VMEM)
    x = jnp.dot(hp, w_em1[...], preferred_element_type=jnp.float32) + c_ref[0:1, :]
    x = jnp.maximum(x, 0.0)
    x = _dot(x, w_em2) + c_ref[1:2, :]
    x = jnp.maximum(x, 0.0)
    x = _dot(x, w_em3) + c_ref[2:3, :]
    edge_attr = _ln(x, c_ref[3:4, :], c_ref[4:5, :])

    # E_GCL edge model: input = [h_emb[row], h_emb[col], radial, edge_attr]
    radial = jnp.sum(cd * cd, axis=-1, keepdims=True)     # (tile, 1) f32
    y = (jnp.dot(hp, w_ge1p[...], preferred_element_type=jnp.float32)
         + radial * c_ref[8:9, :]
         + _dot(edge_attr, w_ge1e)
         + c_ref[5:6, :])
    y = _silu(y)
    y = _dot(y, w_ge2) + c_ref[6:7, :]
    ef = _silu(y)
    ef_ref[...] = ef

    # E_GCL coord model: trans = coord_diff * coord_mlp(edge_feat)
    w = _silu(_dot(ef, w_c1) + c_ref[7:8, :])
    w = _dot(w, w_c2)                                     # (tile, 1)
    tr_ref[...] = cd * w


def _node_kernel(h_ref, agg_ref, w_e, w_n1h, w_n1a, w_n2, w_o, c_ref, o_ref):
    # Fused: embedding_in + E_GCL node model (residual) + embedding_out + bn_h.
    # consts rows: 0 b_emb_in, 1 b_n1, 2 b_n2, 3 b_emb_out, 4 ln_h_w, 5 ln_h_b
    h_emb = _dot(h_ref[...], w_e) + c_ref[0:1, :]
    t = _silu(_dot(h_emb, w_n1h) + _dot(agg_ref[...], w_n1a) + c_ref[1:2, :])
    t = _dot(t, w_n2) + c_ref[2:3, :]
    t = h_emb + t
    t = _dot(t, w_o) + c_ref[3:4, :]
    o_ref[...] = _ln(t, c_ref[4:5, :], c_ref[5:6, :])


# --------------------------------------------------------------------------
# kernel wrappers
# --------------------------------------------------------------------------

def pool_apply(M, coords, h):
    """coords_pool / h_pool = M @ x per graph; B grid axis, natural layout."""
    B, Npad, C = coords.shape
    H = h.shape[-1]
    P = M.shape[0]
    cp, hp = pl.pallas_call(
        _pool_kernel,
        grid=(B,),
        in_specs=[pl.BlockSpec((P, Npad), lambda b: (0, 0)),
                  pl.BlockSpec((None, Npad, C), lambda b: (b, 0, 0)),
                  pl.BlockSpec((None, Npad, H), lambda b: (b, 0, 0))],
        out_specs=(pl.BlockSpec((None, P, C), lambda b: (b, 0, 0)),
                   pl.BlockSpec((None, P, H), lambda b: (b, 0, 0))),
        out_shape=(jax.ShapeDtypeStruct((B, P, C), jnp.float32),
                   jax.ShapeDtypeStruct((B, P, H), jnp.float32)),
        compiler_params=pltpu.CompilerParams(
            dimension_semantics=("parallel",),
            vmem_limit_bytes=_VMEM_LIMIT),
    )(M, coords, h)
    return cp, hp


def fused_edge_params(p, hidden_dim):
    """Pre-cast / pre-fold all edge-kernel weights once (bf16 MXU operands)."""
    H = hidden_dim
    (w1, b1), (w2, b2), (w3, b3) = p["edge_mlp"]
    lnw_e, lnb_e = p["bn_edge"]
    we, be = p["egnn"]["emb_in"]
    (ew1, eb1), (ew2, eb2) = p["egnn"]["gcl_edge"]
    (cw1, cb1), (cw2, _) = p["egnn"]["gcl_coord"]       # last layer has no bias

    # fold embedding_in into the E_GCL edge first layer (pair part):
    #   h_emb @ W = h_pre @ (We @ W) + be @ W
    ge1p = jnp.concatenate([we @ ew1[:H], we @ ew1[H:2 * H]], axis=0)   # (2H, H)
    ge1b = eb1 + be @ (ew1[:H] + ew1[H:2 * H])                          # (H,)
    w_rad = ew1[2 * H]                                                  # (H,)
    ge1e = ew1[2 * H + 1:]                                              # (H, H)

    weights = [w1, w2, w3, ge1p, ge1e, ew2, cw1, cw2]
    weights = [w.astype(jnp.bfloat16) for w in weights]
    consts = jnp.stack([b1, b2, b3, lnw_e, lnb_e, ge1b, eb2, cb1, w_rad], axis=0)
    return weights, consts.astype(jnp.float32)


def fused_node_params(p, hidden_dim):
    H = hidden_dim
    we, be = p["egnn"]["emb_in"]
    (nw1, nb1), (nw2, nb2) = p["egnn"]["gcl_node"]
    ow, ob = p["egnn"]["emb_out"]
    lnw, lnb = p["bn_h"]
    weights = [we, nw1[:H], nw1[H:], nw2, ow]
    weights = [w.astype(jnp.bfloat16) for w in weights]
    consts = jnp.stack([be, nb1, nb2, ob, lnw, lnb], axis=0)
    return weights, consts.astype(jnp.float32)


# --------------------------------------------------------------------------
# Glue: parameter init, edge construction, segment aggregation
# --------------------------------------------------------------------------

def linear_params(key, in_dim, out_dim, bias=True):
    kw, kb = jax.random.split(key)
    bound = 1.0 / np.sqrt(in_dim)
    w = jax.random.uniform(kw, (in_dim, out_dim), jnp.float32, -bound, bound)
    if bias:
        b = jax.random.uniform(kb, (out_dim,), jnp.float32, -bound, bound)
    else:
        b = jnp.zeros((out_dim,), jnp.float32)
    return w, b


def init_params(key, hidden_dim=32):
    keys = jax.random.split(key, 12)
    p = {}
    # MLP(hidden*2, hidden, hidden, relu)  (edge_mlp of EGNNPooling)
    p["edge_mlp"] = [
        linear_params(keys[0], 2 * hidden_dim, hidden_dim),
        linear_params(keys[1], hidden_dim, hidden_dim),
        linear_params(keys[2], hidden_dim, hidden_dim),
    ]
    p["bn_edge"] = (jnp.ones((hidden_dim,), jnp.float32),
                    jnp.zeros((hidden_dim,), jnp.float32))
    p["bn_h"] = (jnp.ones((hidden_dim,), jnp.float32),
                 jnp.zeros((hidden_dim,), jnp.float32))
    egnn = {
        "emb_in": linear_params(keys[3], hidden_dim, hidden_dim),
        "emb_out": linear_params(keys[4], hidden_dim, hidden_dim),
        # E_GCL edge_mlp: Linear(2H+1+H, H) SiLU, Linear(H, H) SiLU
        "gcl_edge": [
            linear_params(keys[5], 3 * hidden_dim + 1, hidden_dim),
            linear_params(keys[6], hidden_dim, hidden_dim),
        ],
        # E_GCL node_mlp: Linear(2H, H) SiLU, Linear(H, H)
        "gcl_node": [
            linear_params(keys[7], 2 * hidden_dim, hidden_dim),
            linear_params(keys[8], hidden_dim, hidden_dim),
        ],
        # E_GCL coord_mlp: Linear(H, H) SiLU, Linear(H, 1, bias=False)
        "gcl_coord": [
            linear_params(keys[9], hidden_dim, hidden_dim),
            linear_params(keys[10], hidden_dim, 1, bias=False),
        ],
    }
    p["egnn"] = egnn
    return p


def build_edges(B, num_node, num_pool, padding, M_np):
    num_pad = num_node + 2 * padding
    nodes_per_graph = num_pad + num_pool
    # complete graph on the padded nodes (both directions, no self loops),
    # then shifted by `padding` exactly as the reference does.
    src, dst = np.meshgrid(np.arange(num_pad), np.arange(num_pad), indexing="ij")
    mask = src != dst
    comp = np.stack([src[mask], dst[mask]], axis=0) + padding
    # pooling edges: pool node <-> covered padded node (both directions)
    row, col = np.where(M_np > 0)
    ip = np.stack([row + num_pad, col], axis=0)
    ip = np.concatenate([ip, ip[::-1]], axis=1)
    per_graph = np.concatenate([comp, ip], axis=1)
    all_edges = [per_graph + i * nodes_per_graph for i in range(B)]
    edge_index = np.concatenate(all_edges, axis=1)
    node_batch = np.repeat(np.arange(B), nodes_per_graph)
    return (jnp.asarray(edge_index, jnp.int32),
            jnp.asarray(node_batch, jnp.int32))


def segment_sum(data, ids, num_segments):
    # TODO(synk): scatter-add stays in XLA; a structured in-kernel fan-in
    # reduction would need the non-uniform pooling-edge tail handled separately.
    return jax.ops.segment_sum(data, ids, num_segments=num_segments)


def segment_mean(data, ids, num_segments):
    s = jax.ops.segment_sum(data, ids, num_segments=num_segments)
    cnt = jax.ops.segment_sum(jnp.ones((data.shape[0], 1), data.dtype), ids,
                              num_segments=num_segments)
    return s / jnp.clip(cnt, 1.0, None)


# --------------------------------------------------------------------------
# EGNNPooling forward
# --------------------------------------------------------------------------

def egnn_pooling_forward(params, h, coords, batch, *,
                         hidden_dim=32, stride=2, kernel=3, padding=1):
    # TODO(synk): EGNN / LayerNorm classes were not provided in the reference;
    # this implements the canonical single-E_GCL EGNN (embedding_in -> E_GCL ->
    # embedding_out, SiLU activations, residual node update, mean coordinate
    # aggregation; reflection_equiv=True => no cross-product term).
    coords_dim = coords.shape[-1]
    B = int(batch[-1]) + 1
    num_node = h.shape[0] // B
    num_pool = (num_node + 2 * padding - kernel) // stride + 1
    num_pad = num_node + 2 * padding

    # average-pooling matrix M (reference builds it in float64; f32 here)
    M_np = np.zeros((num_pool, num_pad), np.float32)
    for i in range(num_pool):
        M_np[i, i * stride:i * stride + kernel] = 1.0 / kernel
    M = jnp.asarray(M_np)

    h = h.reshape(B, num_node, hidden_dim)
    coords = coords.reshape(B, num_node, coords_dim)
    index = jnp.asarray([0] * padding + list(range(num_node))
                        + [num_node - 1] * padding, jnp.int32)
    h = h[:, index, :]
    coords = coords[:, index, :]

    # pooled features / coordinates, per-graph grid, natural layout
    coords_pool, h_pool = pool_apply(M, coords, h)

    edge_index, _node_batch = build_edges(B, num_node, num_pool, padding, M_np)

    h = jnp.concatenate([h, h_pool], axis=1).reshape(-1, hidden_dim)
    coords = jnp.concatenate([coords, coords_pool], axis=1).reshape(-1, coords_dim)

    n_total = h.shape[0]
    row, col = edge_index[0], edge_index[1]

    # one bf16 pair gather: (E, 2H) [h[row] | h[col]]; the same pair feeds the
    # pooling edge_mlp AND (via folded embedding_in weights) the E_GCL edge MLP.
    h_pair = h.astype(jnp.bfloat16)[edge_index.T].reshape(-1, 2 * hidden_dim)
    coord_diff = coords[row] - coords[col]

    edge_w, edge_c = fused_edge_params(params, hidden_dim)
    edge_feat, trans = _row_tiled_call(
        _edge_kernel, [h_pair, coord_diff], edge_w + [edge_c],
        [hidden_dim, coords_dim])

    # coordinate update (mean aggregation) and node-feature aggregation
    coords = coords + segment_mean(trans, row, n_total)
    agg = segment_sum(edge_feat, row, n_total)

    node_w, node_c = fused_node_params(params, hidden_dim)
    h = _row_tiled_call(_node_kernel, [h, agg], node_w + [node_c], [hidden_dim])

    h = h.reshape(B, -1, hidden_dim)
    h_pool = h[:, num_pad:, :].reshape(-1, hidden_dim)
    coords = coords.reshape(B, -1, coords_dim)
    coords_pool = coords[:, num_pad:, :].reshape(-1, coords_dim)
    return h_pool, coords_pool


# --------------------------------------------------------------------------

if __name__ == "__main__":
    key = jax.random.PRNGKey(0)
    k1, k2, k3 = jax.random.split(key, 3)

    B, num_node, hidden_dim, coords_dim = 2, 8, 32, 3
    h = jax.random.normal(k1, (B * num_node, hidden_dim), jnp.float32)
    coords = jax.random.normal(k2, (B * num_node, coords_dim), jnp.float32)
    batch = jnp.repeat(jnp.arange(B, dtype=jnp.int32), num_node)

    params = init_params(k3, hidden_dim)
    h_pool, coords_pool = egnn_pooling_forward(
        params, h, coords, batch,
        hidden_dim=hidden_dim, stride=2, kernel=3, padding=1)

    jax.block_until_ready((h_pool, coords_pool))
    num_pool = (num_node + 2 * 1 - 3) // 2 + 1
    assert h_pool.shape == (B * num_pool, hidden_dim)
    assert coords_pool.shape == (B * num_pool, coords_dim)
    assert bool(jnp.all(jnp.isfinite(h_pool)))
    assert bool(jnp.all(jnp.isfinite(coords_pool)))
    print("KERNEL_OK")
</pallas_src>

<mosaic_0001>
module attributes {stable_mosaic.version = 11 : i64} {
  func.func @_pool_kernel(%arg0: i32, %arg1: memref<4x10xf32, #tpu.memory_space<vmem>>, %arg2: memref<1x10x3xf32, #tpu.memory_space<vmem>>, %arg3: memref<1x10x32xf32, #tpu.memory_space<vmem>>, %arg4: memref<1x4x3xf32, #tpu.memory_space<vmem>>, %arg5: memref<1x4x32xf32, #tpu.memory_space<vmem>>) attributes {dimension_semantics = [#tpu.dimension_semantics<parallel>], iteration_bounds = array<i64: 2>, scalar_prefetch = 0 : i64, scratch_operands = 0 : i64, tpu.core_type = #tpu.core_type<tc>, window_params = [{pipeline_mode = #tpu.pipeline_mode<synchronous>, transform_indices = @transform_0, window_bounds = array<i64: 4, 10>}, {transform_indices = @transform_1, window_bounds = array<i64: 1, 10, 3>}, {transform_indices = @transform_2, window_bounds = array<i64: 1, 10, 32>}, {transform_indices = @transform_3, window_bounds = array<i64: 1, 4, 3>}, {transform_indices = @transform_4, window_bounds = array<i64: 1, 4, 32>}]} {
    %c0 = arith.constant 0 : index
    %c0_0 = arith.constant 0 : index
    %0 = vector.load %arg1[%c0, %c0_0] : memref<4x10xf32, #tpu.memory_space<vmem>>, vector<4x10xf32>
    %c0_1 = arith.constant 0 : index
    %c0_2 = arith.constant 0 : index
    %c0_3 = arith.constant 0 : index
    %1 = vector.load %arg2[%c0_1, %c0_2, %c0_3] : memref<1x10x3xf32, #tpu.memory_space<vmem>>, vector<1x10x3xf32>
    %2 = vector.shape_cast %1 : vector<1x10x3xf32> to vector<10x3xf32>
    %cst = arith.constant dense<0.000000e+00> : vector<4x3xf32>
    %3 = tpu.matmul %0, %2, %cst {dimension_numbers = #tpu.dot_dimension_numbers<[1], [0], [0], [1], [0, 0, 1, 1], [], []>} : vector<4x10xf32>, vector<10x3xf32>, vector<4x3xf32> -> vector<4x3xf32>
    %c0_4 = arith.constant 0 : index
    %c0_5 = arith.constant 0 : index
    %c0_6 = arith.constant 0 : index
    %4 = vector.load %arg4[%c0_4, %c0_5, %c0_6] : memref<1x4x3xf32, #tpu.memory_space<vmem>>, vector<1x4x3xf32>
    %5 = vector.shape_cast %4 : vector<1x4x3xf32> to vector<4x3xf32>
    %6 = vector.shape_cast %3 : vector<4x3xf32> to vector<1x4x3xf32>
    tpu.vector_store %arg4[%c0_4, %c0_5, %c0_6], %6 {strides = array<i32>} : memref<1x4x3xf32, #tpu.memory_space<vmem>>, vector<1x4x3xf32>,
    %c0_7 = arith.constant 0 : index
    %c0_8 = arith.constant 0 : index
    %c0_9 = arith.constant 0 : index
    %7 = vector.load %arg3[%c0_7, %c0_8, %c0_9] : memref<1x10x32xf32, #tpu.memory_space<vmem>>, vector<1x10x32xf32>
    %8 = vector.shape_cast %7 : vector<1x10x32xf32> to vector<10x32xf32>
    %cst_10 = arith.constant dense<0.000000e+00> : vector<4x32xf32>
    %9 = tpu.matmul %0, %8, %cst_10 {dimension_numbers = #tpu.dot_dimension_numbers<[1], [0], [0], [1], [0, 0, 1, 1], [], []>} : vector<4x10xf32>, vector<10x32xf32>, vector<4x32xf32> -> vector<4x32xf32>
    %c0_11 = arith.constant 0 : index
    %c0_12 = arith.constant 0 : index
    %c0_13 = arith.constant 0 : index
    %10 = vector.load %arg5[%c0_11, %c0_12, %c0_13] : memref<1x4x32xf32, #tpu.memory_space<vmem>>, vector<1x4x32xf32>
    %11 = vector.shape_cast %10 : vector<1x4x32xf32> to vector<4x32xf32>
    %12 = vector.shape_cast %9 : vector<4x32xf32> to vector<1x4x32xf32>
    tpu.vector_store %arg5[%c0_11, %c0_12, %c0_13], %12 {strides = array<i32>} : memref<1x4x32xf32, #tpu.memory_space<vmem>>, vector<1x4x32xf32>,
    return
  }
  func.func @transform_0(%arg0: i32) -> (i32, i32) {
    %c0_i32 = arith.constant 0 : i32
    %c0_i32_0 = arith.constant 0 : i32
    %c0_i32_1 = arith.constant 0 : i32
    return %c0_i32, %c0_i32_0 : i32, i32
  }
  func.func @transform_1(%arg0: i32) -> (i32, i32, i32) {
    %c0_i32 = arith.constant 0 : i32
    %c0_i32_0 = arith.constant 0 : i32
    %c0_i32_1 = arith.constant 0 : i32
    return %arg0, %c0_i32, %c0_i32_0 : i32, i32, i32
  }
  func.func @transform_2(%arg0: i32) -> (i32, i32, i32) {
    %c0_i32 = arith.constant 0 : i32
    %c0_i32_0 = arith.constant 0 : i32
    %c0_i32_1 = arith.constant 0 : i32
    return %arg0, %c0_i32, %c0_i32_0 : i32, i32, i32
  }
  func.func @transform_3(%arg0: i32) -> (i32, i32, i32) {
    %c0_i32 = arith.constant 0 : i32
    %c0_i32_0 = arith.constant 0 : i32
    %c0_i32_1 = arith.constant 0 : i32
    return %arg0, %c0_i32, %c0_i32_0 : i32, i32, i32
  }
  func.func @transform_4(%arg0: i32) -> (i32, i32, i32) {
    %c0_i32 = arith.constant 0 : i32
    %c0_i32_0 = arith.constant 0 : i32
    %c0_i32_1 = arith.constant 0 : i32
    return %arg0, %c0_i32, %c0_i32_0 : i32, i32, i32
  }
}

</mosaic_0001>

<llo_original>
// kernel: tpu_custom_call.1
$region0: #{tpu_custom_call.1}
  #allocation0 [shape = 'u32[]', space=smem, size = 0x4, offset = 0x4, fixed_abs, tag = 'smem constant byte address 0x4 - core index']
  #allocation1 [shape = 'u32[144,128]{1,0:T(1,128)}', space=vmem, size = 0x12000, scoped, tag = 'internal scratch']
  %s0 = inlined_call_operand.vmem [shape: f32[4,10], index: 0, kind: input, shape index: {}]
  %s1 = inlined_call_operand.vmem [shape: f32[2,10,3], index: 1, kind: input, shape index: {}]
  %s2 = inlined_call_operand.vmem [shape: f32[2,10,32], index: 2, kind: input, shape index: {}]
  %s3 = inlined_call_operand.vmem [shape: f32[2,4,3], index: 3, kind: output, shape index: {0}]
  %s4 = inlined_call_operand.hbm [shape: f32[2,4,32], index: 4, kind: output, shape index: {1}]
  %5 = xla_tuple %s3, %s4
  %s6 = sld [smem:[#allocation0]]
  $region53: #{tpu_custom_call.1} parent=0
    _
  %s8 = ssub.s32 1, %s6
  %s9 = scalar_select 0, %s8, %s6
  $region1: #{tpu_custom_call.1} parent=0
    #allocation2 [shape = 'u8[4096]{0}', space=vmem, size = 0x1000, scoped, tag = 'output window, operand 1']
    #allocation3 [shape = 's32[2]{0}', space=sflag, size = 0x8, scoped, tag = 'scoped memory for tpu_custom_call.1']
    %10 = vsyncpa [#allocation3], 0
    %s11 = scalar_lea.sflag [#allocation3], 1
    %12 = vsyncpa %s11, 0
    loop: start=0, step=1, limit=4
    $region2: #{tpu_custom_call.1} parent=1 // loop_pre_header
      _
    $region3: #{tpu_custom_call.1} parent=1 // loop_header
      %s14 = sphi 0, %s18
      %p15 = scmp.ge.s32.totalorder %s14, 4
      %s22 = sphi 0, %s22
      %s24 = sphi 0, %s22
      %s25 = sphi 0, %s24
      %s39 = sphi 0, %s25
      %s45 = sphi 0, %s47
      %s48 = sphi 0, %s45
      %s49 = sphi 0, %s48
      %s65 = sphi 0, %s49
      %s71 = sphi 0, %s73
      %s74 = sphi 0, %s71
      %s75 = sphi 0, %s74
      %s91 = sphi 0, %s75
      %s97 = sphi 0, %s99
      %s100 = sphi 0, %s97
      %s101 = sphi 0, %s100
      %s117 = sphi 0, %s101
      %s123 = sphi 0, %s125
      %s126 = sphi 0, %s123
      %s127 = sphi 0, %s126
      %s143 = sphi 0, %s127
    $region4: #{tpu_custom_call.1} parent=1 // loop_header_branch
      %17 = sbr.rel (%p15) target = $region8
    $region5: #{tpu_custom_call.1} parent=1 // loop_body
      %s19 = ssub.s32 %s14, 1
      %s20 = ssub.s32 %s14, 2
      %s21 = sadd.s32 %s14, 1
      %s23 = sadd.s32 %s22, 1
      %p26 = scmp.eq.s32.totalorder %s14, 1
      %p27 = scmp.ne.s32.totalorder %s22, %s24
      %p28 = scmp.eq.s32.totalorder %s14, 0
      %p29 = por %p27, %p28
      %p30 = scmp.ne.s32.totalorder %s22, %s24
      %p31 = scmp.eq.s32.totalorder %s19, 1
      %p32 = por %p30, %p31
      %p33 = scmp.ne.s32.totalorder %s24, %s25
      %p34 = scmp.eq.s32.totalorder %s19, 0
      %p35 = por %p33, %p34
      %p36 = scmp.ne.s32.totalorder %s24, %s25
      %p37 = scmp.eq.s32.totalorder %s20, 1
      %p38 = por %p36, %p37
      %p40 = scmp.ne.s32.totalorder %s25, %s39
      %p41 = scmp.eq.s32.totalorder %s20, 0
      %p42 = por %p40, %p41
      %s43 = ssub.s32 %s14, %s21
      %p44 = scmp.eq.s32.totalorder %s43, 0
      %s46 = sadd.s32 %s45, 1
      %s47 = scalar_select %p44, %s45, %s46
      %p50 = pneg %p44
      %p51 = scmp.eq.s32.totalorder %s14, 1
      %p52 = por %p50, %p51
      %p53 = scmp.ne.s32.totalorder %s45, %s48
      %p54 = scmp.eq.s32.totalorder %s14, 0
      %p55 = por %p53, %p54
      %p56 = scmp.ne.s32.totalorder %s45, %s48
      %p57 = scmp.eq.s32.totalorder %s19, 1
      %p58 = por %p56, %p57
      %p59 = scmp.ne.s32.totalorder %s48, %s49
      %p60 = scmp.eq.s32.totalorder %s19, 0
      %p61 = por %p59, %p60
      %p62 = scmp.ne.s32.totalorder %s48, %s49
      %p63 = scmp.eq.s32.totalorder %s20, 1
      %p64 = por %p62, %p63
      %p66 = scmp.ne.s32.totalorder %s49, %s65
      %p67 = scmp.eq.s32.totalorder %s20, 0
      %p68 = por %p66, %p67
      %s69 = ssub.s32 %s14, %s21
      %p70 = scmp.eq.s32.totalorder %s69, 0
      %s72 = sadd.s32 %s71, 1
      %s73 = scalar_select %p70, %s71, %s72
      %p76 = pneg %p70
      %p77 = scmp.eq.s32.totalorder %s14, 1
      %p78 = por %p76, %p77
      %p79 = scmp.ne.s32.totalorder %s71, %s74
      %p80 = scmp.eq.s32.totalorder %s14, 0
      %p81 = por %p79, %p80
      %p82 = scmp.ne.s32.totalorder %s71, %s74
      %p83 = scmp.eq.s32.totalorder %s19, 1
      %p84 = por %p82, %p83
      %p85 = scmp.ne.s32.totalorder %s74, %s75
      %p86 = scmp.eq.s32.totalorder %s19, 0
      %p87 = por %p85, %p86
      %p88 = scmp.ne.s32.totalorder %s74, %s75
      %p89 = scmp.eq.s32.totalorder %s20, 1
      %p90 = por %p88, %p89
      %p92 = scmp.ne.s32.totalorder %s75, %s91
      %p93 = scmp.eq.s32.totalorder %s20, 0
      %p94 = por %p92, %p93
      %s95 = ssub.s32 %s14, %s21
      %p96 = scmp.eq.s32.totalorder %s95, 0
      %s98 = sadd.s32 %s97, 1
      %s99 = scalar_select %p96, %s97, %s98
      %p102 = pneg %p96
      %p103 = scmp.eq.s32.totalorder %s14, 1
      %p104 = por %p102, %p103
      %p105 = scmp.ne.s32.totalorder %s97, %s100
      %p106 = scmp.eq.s32.totalorder %s14, 0
      %p107 = por %p105, %p106
      %p108 = scmp.ne.s32.totalorder %s97, %s100
      %p109 = scmp.eq.s32.totalorder %s19, 1
      %p110 = por %p108, %p109
      %p111 = scmp.ne.s32.totalorder %s100, %s101
      %p112 = scmp.eq.s32.totalorder %s19, 0
      %p113 = por %p111, %p112
      %p114 = scmp.ne.s32.totalorder %s100, %s101
      %p115 = scmp.eq.s32.totalorder %s20, 1
      %p116 = por %p114, %p115
      %p118 = scmp.ne.s32.totalorder %s101, %s117
      %p119 = scmp.eq.s32.totalorder %s20, 0
      %p120 = por %p118, %p119
      %s121 = ssub.s32 %s14, %s21
      %p122 = scmp.eq.s32.totalorder %s121, 0
      %s124 = sadd.s32 %s123, 1
      %s125 = scalar_select %p122, %s123, %s124
      %p128 = pneg %p122
      %p129 = scmp.eq.s32.totalorder %s14, 1
      %p130 = por %p128, %p129
      %p131 = scmp.ne.s32.totalorder %s123, %s126
      %p132 = scmp.eq.s32.totalorder %s14, 0
      %p133 = por %p131, %p132
      %p134 = scmp.ne.s32.totalorder %s123, %s126
      %p135 = scmp.eq.s32.totalorder %s19, 1
      %p136 = por %p134, %p135
      %p137 = scmp.ne.s32.totalorder %s126, %s127
      %p138 = scmp.eq.s32.totalorder %s19, 0
      %p139 = por %p137, %p138
      %p140 = scmp.ne.s32.totalorder %s126, %s127
      %p141 = scmp.eq.s32.totalorder %s20, 1
      %p142 = por %p140, %p141
      %p144 = scmp.ne.s32.totalorder %s127, %s143
      %p145 = scmp.eq.s32.totalorder %s20, 0
      %p146 = por %p144, %p145
      %p147 = scmp.le.s32.totalorder 1, %s14
      %p148 = scmp.lt.s32.totalorder %s14, 3
      %p149 = pnand %p147, %p148
      %p150 = pneg %p149
      // Predicated region
      $region9: #{tpu_custom_call.1} parent=5 // pred_check
        _
      $region10: #{tpu_custom_call.1} parent=5 // pred_check_branch
        %152 = sbr.rel (%p149) target = $region12
      $region11: #{tpu_custom_call.1} parent=5 // pred_region
        %s153 = ssub.s32 %s14, 1
        // Predicated region
        $region13: #{tpu_custom_call.1} parent=11 // pred_check
          %p154 = pneg %p35
        $region14: #{tpu_custom_call.1} parent=11 // pred_check_branch
          %156 = sbr.rel (%p154) target = $region16
        $region15: #{tpu_custom_call.1} parent=11 // pred_region
          _
        $region16: #{tpu_custom_call.1} parent=11 // pred_fallthru
          _
      $region12: #{tpu_custom_call.1} parent=5 // pred_fallthru
        _
      %p157 = scmp.lt.s32.totalorder %s14, 2
      // Predicated region
      $region17: #{tpu_custom_call.1} parent=5 // pred_check
        %p158 = pneg %p157
      $region18: #{tpu_custom_call.1} parent=5 // pred_check_branch
        %160 = sbr.rel (%p158) target = $region20
      $region19: #{tpu_custom_call.1} parent=5 // pred_region
        // Predicated region
        $region21: #{tpu_custom_call.1} parent=19 // pred_check
          %p161 = pneg %p55
        $region22: #{tpu_custom_call.1} parent=19 // pred_check_branch
          %163 = sbr.rel (%p161) target = $region24
        $region23: #{tpu_custom_call.1} parent=19 // pred_region
          %p164 = scmp.lt.s32.totalorder %s14, 1
          %s165 = scalar_select %p164, %s14, 1
          %s166 = smul.addr %s165, 2
          %s167 = smul.addr %s166, 8
          %s168 = scalar_lea.vmem %s1, %s167
        $region24: #{tpu_custom_call.1} parent=19 // pred_fallthru
          _
        // Predicated region
        $region25: #{tpu_custom_call.1} parent=19 // pred_check
          %p169 = pneg %p81
        $region26: #{tpu_custom_call.1} parent=19 // pred_check_branch
          %171 = sbr.rel (%p169) target = $region28
        $region27: #{tpu_custom_call.1} parent=19 // pred_region
          %p172 = scmp.lt.s32.totalorder %s14, 1
          %s173 = scalar_select %p172, %s14, 1
          %s174 = smul.addr %s173, 2
          %s175 = smul.addr %s174, 8
          %s176 = scalar_lea.vmem %s2, %s175
        $region28: #{tpu_custom_call.1} parent=19 // pred_fallthru
          _
      $region20: #{tpu_custom_call.1} parent=5 // pred_fallthru
        _
      %p177 = scmp.le.s32.totalorder 1, %s14
      %p178 = scmp.lt.s32.totalorder %s14, 3
      %p179 = pnand %p177, %p178
      %p180 = pneg %p179
      // Predicated region
      $region29: #{tpu_custom_call.1} parent=5 // pred_check
        _
      $region30: #{tpu_custom_call.1} parent=5 // pred_check_branch
        %182 = sbr.rel (%p179) target = $region32
      $region31: #{tpu_custom_call.1} parent=5 // pred_region
        %s183 = ssub.s32 %s14, 1
        %p184 = pneg %p35
        %p185 = pneg %p32
        %p186 = scmp.lt.s32.totalorder %s19, 1
        %s187 = scalar_select %p186, %s19, 1
        %s188 = smul.addr %s187, 2
        %s189 = smul.addr %s188, 8
        %s190 = scalar_lea.vmem %s1, %s189
        %p191 = pneg %p61
        %p192 = pneg %p58
        %p193 = scmp.lt.s32.totalorder %s19, 1
        %s194 = scalar_select %p193, %s19, 1
        %s195 = smul.addr %s194, 2
        %s196 = smul.addr %s195, 8
        %s197 = scalar_lea.vmem %s2, %s196
        %p198 = pneg %p87
        %p199 = pneg %p84
        %p200 = pneg %p113
        %p201 = pneg %p110
        %p202 = scmp.lt.s32.totalorder %s19, 1
        %s203 = scalar_select %p202, %s19, 1
        %s204 = smul.addr %s203, 4
        %s205 = scalar_lea.vmem %s3, %s204
        %p206 = pneg %p139
        %p207 = pneg %p136
        %s208 = sand.u32 %s126, 1
        %s209 = scalar_lea.sflag [#allocation3], %s208
        %s210 = sand.u32 %s126, 1
        %s211 = smul.addr %s210, 4
        %s212 = scalar_lea.vmem [#allocation2], %s211
        %p213 = scmp.lt.s32.totalorder %s19, 1
        %s214 = scalar_select %p213, %s19, 1
        %s215 = smul.addr %s214, 2
        %s216 = smul.addr %s215, 8
        %s217 = scalar_lea.vmem %s1, %s216
        %p218 = scmp.lt.s32.totalorder %s19, 1
        %s219 = scalar_select %p218, %s19, 1
        %s220 = smul.addr %s219, 2
        %s221 = smul.addr %s220, 8
        %s222 = scalar_lea.vmem %s2, %s221
        %p223 = scmp.lt.s32.totalorder %s19, 1
        %s224 = scalar_select %p223, %s19, 1
        %s225 = smul.addr %s224, 4
        %s226 = scalar_lea.vmem %s3, %s225
        %v227 = vld [vmem:[%s0] sm:$0xf]
        %v228 = vld [vmem:[%s217] sm:$0xff]
        %v229 = vld [vmem:[%s217 + $0x8] sm:$0x3]
        %vm230 = vcmask 80896
        %v232 = vsel %vm230, %v227, 0
        %vm234 = vcmask 1041408
        %v236 = vsel %vm234, %v229, 0
        %238 = vmatprep.subr.mxu0 0.0
        %239 = vmatpush1.msra.mxu0 0.0
        %240 = vmatprep.subr.mxu0 0.0
        %241 = vmatpush1.msra.mxu0 0.0
        %242 = vmatprep.subr.mxu0 0.0
        %243 = vmatpush1.msra.mxu0 0.0
        %244 = vmatprep.subr.mxu0 0.0
        %245 = vmatpush1.msra.mxu0 0.0
        %246 = vmatprep.subr.mxu0 0.0
        %247 = vmatpush1.msra.mxu0 0.0
        %248 = vmatprep.subr.mxu0 0.0
        %249 = vmatpush1.msra.mxu0 0.0
        %250 = vmatprep.subr.mxu0 0.0
        %251 = vmatpush1.msra.mxu0 0.0
        %252 = vmatprep.subr.mxu0 0.0
        %253 = vmatpush1.msra.mxu0 0.0
        %254 = vmatprep.subr.mxu0 0.0
        %255 = vmatpush1.msra.mxu0 0.0
        %256 = vmatprep.subr.mxu0 0.0
        %257 = vmatpush1.msra.mxu0 0.0
        %258 = vmatprep.subr.mxu0 0.0
        %259 = vmatpush1.msra.mxu0 0.0
        %260 = vmatprep.subr.mxu0 0.0
        %261 = vmatpush1.msra.mxu0 0.0
        %262 = vmatprep.subr.mxu0 0.0
        %263 = vmatpush1.msra.mxu0 0.0
        %264 = vmatprep.subr.mxu0 0.0
        %265 = vmatpush1.msra.mxu0 0.0
        %266 = vmatprep.subr.mxu0 0.0
        %267 = vmatpush1.msra.mxu0 %v236
        %268 = vmatprep.subr.mxu0 0.0
        %269 = vmatpush1.msra.mxu0 %v228
        %270 = vmatprep.subr.mxu0 0.0
        %271 = vmatpush2.msra.mxu0 0.0
        %272 = vmatprep.subr.mxu0 0.0
        %273 = vmatpush2.msra.mxu0 0.0
        %274 = vmatprep.subr.mxu0 0.0
        %275 = vmatpush2.msra.mxu0 0.0
        %276 = vmatprep.subr.mxu0 0.0
        %277 = vmatpush2.msra.mxu0 0.0
        %278 = vmatprep.subr.mxu0 0.0
        %279 = vmatpush2.msra.mxu0 0.0
        %280 = vmatprep.subr.mxu0 0.0
        %281 = vmatpush2.msra.mxu0 0.0
        %282 = vmatprep.subr.mxu0 0.0
        %283 = vmatpush2.msra.mxu0 0.0
        %284 = vmatprep.subr.mxu0 0.0
        %285 = vmatpush2.msra.mxu0 0.0
        %286 = vmatprep.subr.mxu0 0.0
        %287 = vmatpush2.msra.mxu0 0.0
        %288 = vmatprep.subr.mxu0 0.0
        %289 = vmatpush2.msra.mxu0 0.0
        %290 = vmatprep.subr.mxu0 0.0
        %291 = vmatpush2.msra.mxu0 0.0
        %292 = vmatprep.subr.mxu0 0.0
        %293 = vmatpush2.msra.mxu0 0.0
        %294 = vmatprep.subr.mxu0 0.0
        %295 = vmatpush2.msra.mxu0 0.0
        %296 = vmatprep.subr.mxu0 0.0
        %297 = vmatpush2.msra.mxu0 0.0
        %298 = vmatprep.subr.mxu0 0.0
        %299 = vmatpush2.msra.mxu0 0.0
        %300 = vmatprep.subr.mxu0 0.0
        %301 = vmatpush2.msra.mxu0 0.0
        %302 = vmatprep.mubr.f32.mxu0 0.0
        %303 = vmatmul.mubr.f32.gmra.mxu0 %v232
        %v304 = vpop.f32.mrf.mxu0
        %v305 = vadd.f32 0.0, %v304
        %v306 = vpop.f32.mrf.mxu0
        %307 = vdwg.mxu0
        %vm308 = vcmask 19456
        %309 = vst.msk [vmem:[%s226] sm:$0xf] %vm308, %v305
        %v310 = vld [vmem:[%s222] sm:$0xff]
        %v311 = vld [vmem:[%s222 + $0x8] sm:$0x3]
        %v313 = vsel %vm234, %v311, 0
        %315 = vmatprep.subr.mxu0 0.0
        %316 = vmatpush1.msra.mxu0 0.0
        %317 = vmatprep.subr.mxu0 0.0
        %318 = vmatpush1.msra.mxu0 0.0
        %319 = vmatprep.subr.mxu0 0.0
        %320 = vmatpush1.msra.mxu0 0.0
        %321 = vmatprep.subr.mxu0 0.0
        %322 = vmatpush1.msra.mxu0 0.0
        %323 = vmatprep.subr.mxu0 0.0
        %324 = vmatpush1.msra.mxu0 0.0
        %325 = vmatprep.subr.mxu0 0.0
        %326 = vmatpush1.msra.mxu0 0.0
        %327 = vmatprep.subr.mxu0 0.0
        %328 = vmatpush1.msra.mxu0 0.0
        %329 = vmatprep.subr.mxu0 0.0
        %330 = vmatpush1.msra.mxu0 0.0
        %331 = vmatprep.subr.mxu0 0.0
        %332 = vmatpush1.msra.mxu0 0.0
        %333 = vmatprep.subr.mxu0 0.0
        %334 = vmatpush1.msra.mxu0 0.0
        %335 = vmatprep.subr.mxu0 0.0
        %336 = vmatpush1.msra.mxu0 0.0
        %337 = vmatprep.subr.mxu0 0.0
        %338 = vmatpush1.msra.mxu0 0.0
        %339 = vmatprep.subr.mxu0 0.0
        %340 = vmatpush1.msra.mxu0 0.0
        %341 = vmatprep.subr.mxu0 0.0
        %342 = vmatpush1.msra.mxu0 0.0
        %343 = vmatprep.subr.mxu0 0.0
        %344 = vmatpush1.msra.mxu0 %v313
        %345 = vmatprep.subr.mxu0 0.0
        %346 = vmatpush1.msra.mxu0 %v310
        %347 = vmatprep.subr.mxu0 0.0
        %348 = vmatpush2.msra.mxu0 0.0
        %349 = vmatprep.subr.mxu0 0.0
        %350 = vmatpush2.msra.mxu0 0.0
        %351 = vmatprep.subr.mxu0 0.0
        %352 = vmatpush2.msra.mxu0 0.0
        %353 = vmatprep.subr.mxu0 0.0
        %354 = vmatpush2.msra.mxu0 0.0
        %355 = vmatprep.subr.mxu0 0.0
        %356 = vmatpush2.msra.mxu0 0.0
        %357 = vmatprep.subr.mxu0 0.0
        %358 = vmatpush2.msra.mxu0 0.0
        %359 = vmatprep.subr.mxu0 0.0
        %360 = vmatpush2.msra.mxu0 0.0
        %361 = vmatprep.subr.mxu0 0.0
        %362 = vmatpush2.msra.mxu0 0.0
        %363 = vmatprep.subr.mxu0 0.0
        %364 = vmatpush2.msra.mxu0 0.0
        %365 = vmatprep.subr.mxu0 0.0
        %366 = vmatpush2.msra.mxu0 0.0
        %367 = vmatprep.subr.mxu0 0.0
        %368 = vmatpush2.msra.mxu0 0.0
        %369 = vmatprep.subr.mxu0 0.0
        %370 = vmatpush2.msra.mxu0 0.0
        %371 = vmatprep.subr.mxu0 0.0
        %372 = vmatpush2.msra.mxu0 0.0
        %373 = vmatprep.subr.mxu0 0.0
        %374 = vmatpush2.msra.mxu0 0.0
        %375 = vmatprep.subr.mxu0 0.0
        %376 = vmatpush2.msra.mxu0 0.0
        %377 = vmatprep.subr.mxu0 0.0
        %378 = vmatpush2.msra.mxu0 0.0
        %379 = vmatprep.mubr.f32.mxu0 0.0
        %380 = vmatmul.mubr.f32.gmra.mxu0 %v232
        %v381 = vpop.f32.mrf.mxu0
        %v382 = vadd.f32 0.0, %v381
        %v383 = vpop.f32.mrf.mxu0
        %384 = vdwg.mxu0
        %vm385 = vcmask 257024
        %386 = vst.msk [vmem:[%s212] sm:$0xf] %vm385, %v382
        %p387 = scmp.lt.s32.totalorder %s19, 1
        %s388 = scalar_select %p387, %s19, 1
        %s389 = smul.addr %s388, 4
        %s390 = scalar_lea.vmem %s3, %s389
        %s391 = sand.u32 %s126, 1
        %s392 = scalar_lea.sflag [#allocation3], %s391
        %s393 = sand.u32 %s126, 1
        %s394 = smul.addr %s393, 4
        %s395 = scalar_lea.vmem [#allocation2], %s394
        // Predicated region
        $region33: #{tpu_custom_call.1} parent=31 // pred_check
          %p396 = pneg %p110
        $region34: #{tpu_custom_call.1} parent=31 // pred_check_branch
          %398 = sbr.rel (%p396) target = $region36
        $region35: #{tpu_custom_call.1} parent=31 // pred_region
          _
        $region36: #{tpu_custom_call.1} parent=31 // pred_fallthru
          _
        // Predicated region
        $region37: #{tpu_custom_call.1} parent=31 // pred_check
          %p399 = pneg %p136
        $region38: #{tpu_custom_call.1} parent=31 // pred_check_branch
          %401 = sbr.rel (%p399) target = $region40
        $region39: #{tpu_custom_call.1} parent=31 // pred_region
          %s403 = ssub.s32 64, 64
          %404 = vsyncadd %s392, %s403
          %s405 = smul.addr %s19, 64
          %s406 = scalar_lea.hbm %s4, %s405
          %s408 = sshll.u32 %s395, 4
          %s409 = int_to_ptr.vmem [resolvable:$true] %s408
          %411 = dma.vmem_to_hbm [thread:$0]  %s409, 64, %s406, %s392
        $region40: #{tpu_custom_call.1} parent=31 // pred_fallthru
          _
      $region32: #{tpu_custom_call.1} parent=5 // pred_fallthru
        _
      %p412 = scmp.le.s32.totalorder 2, %s14
      // Predicated region
      $region41: #{tpu_custom_call.1} parent=5 // pred_check
        %p413 = pneg %p412
      $region42: #{tpu_custom_call.1} parent=5 // pred_check_branch
        %415 = sbr.rel (%p413) target = $region44
      $region43: #{tpu_custom_call.1} parent=5 // pred_region
        %s416 = ssub.s32 %s14, 2
        // Predicated region
        $region45: #{tpu_custom_call.1} parent=43 // pred_check
          %p417 = pneg %p116
        $region46: #{tpu_custom_call.1} parent=43 // pred_check_branch
          %419 = sbr.rel (%p417) target = $region48
        $region47: #{tpu_custom_call.1} parent=43 // pred_region
          %p420 = scmp.lt.s32.totalorder %s20, 1
          %s421 = scalar_select %p420, %s20, 1
          %s422 = smul.addr %s421, 4
          %s423 = scalar_lea.vmem %s3, %s422
        $region48: #{tpu_custom_call.1} parent=43 // pred_fallthru
          _
        // Predicated region
        $region49: #{tpu_custom_call.1} parent=43 // pred_check
          %p424 = pneg %p142
        $region50: #{tpu_custom_call.1} parent=43 // pred_check_branch
          %426 = sbr.rel (%p424) target = $region52
        $region51: #{tpu_custom_call.1} parent=43 // pred_region
          %s427 = sand.u32 %s127, 1
          %s428 = scalar_lea.sflag [#allocation3], %s427
          %s429 = sand.u32 %s127, 1
          %s430 = smul.addr %s429, 4
          %s431 = scalar_lea.vmem [#allocation2], %s430
          %432 = dma.done %s428, 64
        $region52: #{tpu_custom_call.1} parent=43 // pred_fallthru
          _
      $region44: #{tpu_custom_call.1} parent=5 // pred_fallthru
        _
    $region6: #{tpu_custom_call.1} parent=1 // loop_footer
      %s18 = sadd.s32 1, %s14
    $region7: #{tpu_custom_call.1} parent=1 // loop_footer_branch
      %13 = sbr.rel target = $region3
    $region8: #{tpu_custom_call.1} parent=1 // loop_exit
      _
    %433 = vsyncpa [#allocation3], 1
    %s434 = scalar_lea.sflag [#allocation3], 1
    %435 = vsyncpa %s434, 1

</llo_original>
